<compile_context>
chip_gen: v7x
topology: tpu7x:2x2x1
jax: 0.10.0
libtpu: 0.0.40
codegen_flags: <defaults>
</compile_context>

<pallas_src>
import functools

import jax
import jax.numpy as jnp
from jax.experimental import pallas as pl
from jax.experimental.pallas import tpu as pltpu

KERNEL_SIZE = 3
PAD = 1          # stride=1, padding=1 -> "same" length output
LANE = 128       # lane width; internal channel dim is padded to a multiple of this
TOP = 8          # top halo rows in the VMEM activation buffer (keeps stores 8-aligned)


def _round_up(x, m):
    return (x + m - 1) // m * m


def _encoder_kernel(x_ref, w_ref, b_ref, o_ref, buf_ref, *, n_layers, L, C):
    # x_ref : (1, L, C)               bf16 activation, channels pre-padded to C
    # w_ref : (n_layers, K*C, C)      bf16 fused-tap weights (tap-major rows)
    # b_ref : (n_layers, 1, C)        f32 biases
    # o_ref : (1, L, C)               final output
    # buf_ref: (rows, C) VMEM scratch padded activation buffer (zero halo rows)
    rows = buf_ref.shape[0]
    zdt = buf_ref.dtype

    # Zero halo rows (above and below the valid region), load this batch element.
    buf_ref[pl.ds(0, TOP), :] = jnp.zeros((TOP, C), zdt)
    buf_ref[pl.ds(TOP + L, rows - TOP - L), :] = jnp.zeros((rows - TOP - L, C), zdt)
    buf_ref[pl.ds(TOP, L), :] = x_ref[0]

    for layer in range(n_layers):
        # Fused-tap operand: row i = [x[i-1], x[i], x[i+1]] over channels -> (L, K*C).
        taps = [buf_ref[pl.ds(TOP - PAD + k, L), :] for k in range(KERNEL_SIZE)]
        x_cat = jnp.concatenate(taps, axis=-1)
        # Single MXU matmul per layer, f32 accumulation.
        y = jnp.dot(x_cat, w_ref[layer], preferred_element_type=jnp.float32)
        y = jnp.maximum(y + b_ref[layer], 0.0)
        if layer + 1 < n_layers:
            buf_ref[pl.ds(TOP, L), :] = y.astype(zdt)      # stays in VMEM
        else:
            o_ref[0] = y.astype(o_ref.dtype)               # only final layer hits HBM


def prepare_params(params, d_input, compute_dtype=jnp.bfloat16):
    """Pack PyTorch-layout conv params into MXU-friendly fused-tap tensors.

    params: list of (w, b) with w in PyTorch layout (Cout, Cin, K), b (Cout,).
    Returns (w_all, b_all, C):
      w_all: (n_layers, K*C, C) compute_dtype, rows ordered tap-major then channel,
      b_all: (n_layers, 1, C) float32, zero-padded channels.
    """
    d_model = params[0][0].shape[0]
    C = _round_up(max(d_input, d_model), LANE)
    w_list, b_list = [], []
    for (w, b) in params:
        cout, cin, k = w.shape
        assert k == KERNEL_SIZE
        w_kio = jnp.transpose(w, (2, 1, 0))                       # (K, Cin, Cout)
        w_kio = jnp.pad(w_kio, ((0, 0), (0, C - cin), (0, C - cout)))
        w_list.append(w_kio.reshape(KERNEL_SIZE * C, C))
        b_list.append(jnp.pad(b, (0, C - cout)))
    w_all = jnp.stack(w_list).astype(compute_dtype)               # (n_layers, K*C, C)
    b_all = jnp.stack(b_list)[:, None, :].astype(jnp.float32)     # (n_layers, 1, C)
    return w_all, b_all, C


def conv1d_encoder_forward(x_ncl, params, compute_dtype=jnp.bfloat16):
    """params: list of (w, b) with w in PyTorch layout (Cout, Cin, K), b (Cout,)."""
    N, d_input, L = x_ncl.shape
    n_layers = len(params)
    d_model = params[0][0].shape[0]
    K = KERNEL_SIZE

    w_all, b_all, C = prepare_params(params, d_input, compute_dtype)

    # NCL -> NLC, channels padded once to a lane multiple, cast to bf16 for the
    # HBM -> VMEM stream.
    x_nlc = jnp.transpose(x_ncl, (0, 2, 1))
    x_nlc = jnp.pad(x_nlc, ((0, 0), (0, 0), (0, C - d_input))).astype(compute_dtype)

    rows = TOP + _round_up(L + PAD, 8)   # padded activation buffer height

    kernel = functools.partial(_encoder_kernel, n_layers=n_layers, L=L, C=C)
    out = pl.pallas_call(
        kernel,
        out_shape=jax.ShapeDtypeStruct((N, L, C), x_ncl.dtype),
        grid=(N,),
        in_specs=[
            pl.BlockSpec((1, L, C), lambda n: (n, 0, 0)),
            pl.BlockSpec((n_layers, K * C, C), lambda n: (0, 0, 0)),
            pl.BlockSpec((n_layers, 1, C), lambda n: (0, 0, 0)),
        ],
        out_specs=pl.BlockSpec((1, L, C), lambda n: (n, 0, 0)),
        scratch_shapes=[pltpu.VMEM((rows, C), compute_dtype)],
        compiler_params=pltpu.CompilerParams(
            dimension_semantics=("parallel",),
            vmem_limit_bytes=32 * 1024 * 1024),
    )(x_nlc, w_all, b_all)

    # Drop channel padding, NLC -> NCL.
    return jnp.transpose(out[:, :, :d_model], (0, 2, 1))


def init_params(key, n_layers, d_input, d_model):
    """Deterministic init matching PyTorch Conv1d parameter shapes."""
    params = []
    cin = d_input
    for _ in range(n_layers):
        key, kw, kb = jax.random.split(key, 3)
        bound = 1.0 / (cin * KERNEL_SIZE) ** 0.5
        w = jax.random.uniform(kw, (d_model, cin, KERNEL_SIZE),
                               jnp.float32, -bound, bound)
        b = jax.random.uniform(kb, (d_model,), jnp.float32, -bound, bound)
        params.append((w, b))
        cin = d_model
    return params


if __name__ == "__main__":
    n_layers, d_input, d_model = 2, 4, 32
    N, L = 2, 16

    key = jax.random.PRNGKey(0)
    key, kp, kx = jax.random.split(key, 3)
    params = init_params(kp, n_layers, d_input, d_model)
    x = jax.random.normal(kx, (N, d_input, L), jnp.float32)   # NCL, like PyTorch

    out = conv1d_encoder_forward(x, params)
    out = jax.block_until_ready(out)
    assert out.shape == (N, d_model, L)

    # Reference check against XLA conv (same semantics as the PyTorch module).
    # Tolerance loosened for bf16 activations/weights (f32 accumulation).
    ref = x
    for (w, b) in params:
        ref = jax.lax.conv_general_dilated(
            ref, w, window_strides=(1,), padding=[(PAD, PAD)],
            dimension_numbers=("NCH", "OIH", "NCH"))
        ref = jnp.maximum(ref + b[None, :, None], 0.0)
    assert jnp.allclose(out, ref, atol=5e-2, rtol=5e-2), \
        float(jnp.max(jnp.abs(out - ref)))

    print("KERNEL_OK")
</pallas_src>

<mosaic_0001>
module attributes {stable_mosaic.version = 11 : i64} {
  func.func @_encoder_kernel(%arg0: i32, %arg1: memref<1x16x128xbf16, #tpu.memory_space<vmem>>, %arg2: memref<2x384x128xbf16, #tpu.memory_space<vmem>>, %arg3: memref<2x1x128xf32, #tpu.memory_space<vmem>>, %arg4: memref<1x16x128xf32, #tpu.memory_space<vmem>>, %arg5: memref<32x128xbf16, #tpu.memory_space<vmem>>) attributes {dimension_semantics = [#tpu.dimension_semantics<parallel>], iteration_bounds = array<i64: 2>, scalar_prefetch = 0 : i64, scratch_operands = 1 : i64, tpu.core_type = #tpu.core_type<tc>, window_params = [{transform_indices = @transform_0, window_bounds = array<i64: 1, 16, 128>}, {pipeline_mode = #tpu.pipeline_mode<synchronous>, transform_indices = @transform_1, window_bounds = array<i64: 2, 384, 128>}, {pipeline_mode = #tpu.pipeline_mode<synchronous>, transform_indices = @transform_2, window_bounds = array<i64: 2, 1, 128>}, {transform_indices = @transform_3, window_bounds = array<i64: 1, 16, 128>}]} {
    %cst = arith.constant 0.000000e+00 : bf16
    %0 = vector.broadcast %cst : bf16 to vector<8x128xbf16>
    %c0 = arith.constant 0 : index
    %c0_0 = arith.constant 0 : index
    %1 = vector.load %arg5[%c0, %c0_0] : memref<32x128xbf16, #tpu.memory_space<vmem>>, vector<8x128xbf16>
    tpu.vector_store %arg5[%c0, %c0_0], %0 {strides = array<i32>} : memref<32x128xbf16, #tpu.memory_space<vmem>>, vector<8x128xbf16>,
    %cst_1 = arith.constant 0.000000e+00 : bf16
    %2 = vector.broadcast %cst_1 : bf16 to vector<8x128xbf16>
    %c24 = arith.constant 24 : index
    %c0_2 = arith.constant 0 : index
    %3 = vector.load %arg5[%c24, %c0_2] : memref<32x128xbf16, #tpu.memory_space<vmem>>, vector<8x128xbf16>
    tpu.vector_store %arg5[%c24, %c0_2], %2 {strides = array<i32>} : memref<32x128xbf16, #tpu.memory_space<vmem>>, vector<8x128xbf16>,
    %c0_3 = arith.constant 0 : index
    %c0_4 = arith.constant 0 : index
    %c0_5 = arith.constant 0 : index
    %4 = vector.load %arg1[%c0_3, %c0_4, %c0_5] : memref<1x16x128xbf16, #tpu.memory_space<vmem>>, vector<1x16x128xbf16>
    %5 = vector.shape_cast %4 : vector<1x16x128xbf16> to vector<16x128xbf16>
    %c8 = arith.constant 8 : index
    %c0_6 = arith.constant 0 : index
    %6 = vector.load %arg5[%c8, %c0_6] : memref<32x128xbf16, #tpu.memory_space<vmem>>, vector<16x128xbf16>
    tpu.vector_store %arg5[%c8, %c0_6], %5 {strides = array<i32>} : memref<32x128xbf16, #tpu.memory_space<vmem>>, vector<16x128xbf16>,
    %c7 = arith.constant 7 : index
    %c0_7 = arith.constant 0 : index
    %7 = vector.load %arg5[%c7, %c0_7] : memref<32x128xbf16, #tpu.memory_space<vmem>>, vector<16x128xbf16>
    %c8_8 = arith.constant 8 : index
    %c0_9 = arith.constant 0 : index
    %8 = vector.load %arg5[%c8_8, %c0_9] : memref<32x128xbf16, #tpu.memory_space<vmem>>, vector<16x128xbf16>
    %c9 = arith.constant 9 : index
    %c0_10 = arith.constant 0 : index
    %9 = vector.load %arg5[%c9, %c0_10] : memref<32x128xbf16, #tpu.memory_space<vmem>>, vector<16x128xbf16>
    %10 = tpu.concatenate %7, %8, %9 in 1 : vector<16x128xbf16>, vector<16x128xbf16>, vector<16x128xbf16> -> vector<16x384xbf16>
    %c0_11 = arith.constant 0 : index
    %c0_12 = arith.constant 0 : index
    %c0_13 = arith.constant 0 : index
    %11 = vector.load %arg2[%c0_11, %c0_12, %c0_13] : memref<2x384x128xbf16, #tpu.memory_space<vmem>>, vector<1x384x128xbf16>
    %12 = vector.shape_cast %11 : vector<1x384x128xbf16> to vector<384x128xbf16>
    %cst_14 = arith.constant dense<0.000000e+00> : vector<16x128xf32>
    %13 = tpu.matmul %10, %12, %cst_14 {dimension_numbers = #tpu.dot_dimension_numbers<[1], [0], [0], [1], [0, 0, 1, 1], [], []>} : vector<16x384xbf16>, vector<384x128xbf16>, vector<16x128xf32> -> vector<16x128xf32>
    %c0_15 = arith.constant 0 : index
    %c0_16 = arith.constant 0 : index
    %c0_17 = arith.constant 0 : index
    %14 = vector.load %arg3[%c0_15, %c0_16, %c0_17] : memref<2x1x128xf32, #tpu.memory_space<vmem>>, vector<1x1x128xf32>
    %15 = vector.shape_cast %14 : vector<1x1x128xf32> to vector<1x128xf32>
    %16 = vector.broadcast %15 : vector<1x128xf32> to vector<16x128xf32>
    %17 = arith.addf %13, %16 : vector<16x128xf32>
    %cst_18 = arith.constant 0.000000e+00 : f32
    %18 = vector.broadcast %cst_18 : f32 to vector<16x128xf32>
    %19 = arith.maximumf %17, %18 : vector<16x128xf32>
    %20 = arith.truncf %19 : vector<16x128xf32> to vector<16x128xbf16>
    %c8_19 = arith.constant 8 : index
    %c0_20 = arith.constant 0 : index
    %21 = vector.load %arg5[%c8_19, %c0_20] : memref<32x128xbf16, #tpu.memory_space<vmem>>, vector<16x128xbf16>
    tpu.vector_store %arg5[%c8_19, %c0_20], %20 {strides = array<i32>} : memref<32x128xbf16, #tpu.memory_space<vmem>>, vector<16x128xbf16>,
    %c7_21 = arith.constant 7 : index
    %c0_22 = arith.constant 0 : index
    %22 = vector.load %arg5[%c7_21, %c0_22] : memref<32x128xbf16, #tpu.memory_space<vmem>>, vector<16x128xbf16>
    %c8_23 = arith.constant 8 : index
    %c0_24 = arith.constant 0 : index
    %23 = vector.load %arg5[%c8_23, %c0_24] : memref<32x128xbf16, #tpu.memory_space<vmem>>, vector<16x128xbf16>
    %c9_25 = arith.constant 9 : index
    %c0_26 = arith.constant 0 : index
    %24 = vector.load %arg5[%c9_25, %c0_26] : memref<32x128xbf16, #tpu.memory_space<vmem>>, vector<16x128xbf16>
    %25 = tpu.concatenate %22, %23, %24 in 1 : vector<16x128xbf16>, vector<16x128xbf16>, vector<16x128xbf16> -> vector<16x384xbf16>
    %c1 = arith.constant 1 : index
    %c0_27 = arith.constant 0 : index
    %c0_28 = arith.constant 0 : index
    %26 = vector.load %arg2[%c1, %c0_27, %c0_28] : memref<2x384x128xbf16, #tpu.memory_space<vmem>>, vector<1x384x128xbf16>
    %27 = vector.shape_cast %26 : vector<1x384x128xbf16> to vector<384x128xbf16>
    %cst_29 = arith.constant dense<0.000000e+00> : vector<16x128xf32>
    %28 = tpu.matmul %25, %27, %cst_29 {dimension_numbers = #tpu.dot_dimension_numbers<[1], [0], [0], [1], [0, 0, 1, 1], [], []>} : vector<16x384xbf16>, vector<384x128xbf16>, vector<16x128xf32> -> vector<16x128xf32>
    %c1_30 = arith.constant 1 : index
    %c0_31 = arith.constant 0 : index
    %c0_32 = arith.constant 0 : index
    %29 = vector.load %arg3[%c1_30, %c0_31, %c0_32] : memref<2x1x128xf32, #tpu.memory_space<vmem>>, vector<1x1x128xf32>
    %30 = vector.shape_cast %29 : vector<1x1x128xf32> to vector<1x128xf32>
    %31 = vector.broadcast %30 : vector<1x128xf32> to vector<16x128xf32>
    %32 = arith.addf %28, %31 : vector<16x128xf32>
    %cst_33 = arith.constant 0.000000e+00 : f32
    %33 = vector.broadcast %cst_33 : f32 to vector<16x128xf32>
    %34 = arith.maximumf %32, %33 : vector<16x128xf32>
    %c0_34 = arith.constant 0 : index
    %c0_35 = arith.constant 0 : index
    %c0_36 = arith.constant 0 : index
    %35 = vector.load %arg4[%c0_34, %c0_35, %c0_36] : memref<1x16x128xf32, #tpu.memory_space<vmem>>, vector<1x16x128xf32>
    %36 = vector.shape_cast %35 : vector<1x16x128xf32> to vector<16x128xf32>
    %37 = vector.shape_cast %34 : vector<16x128xf32> to vector<1x16x128xf32>
    tpu.vector_store %arg4[%c0_34, %c0_35, %c0_36], %37 {strides = array<i32>} : memref<1x16x128xf32, #tpu.memory_space<vmem>>, vector<1x16x128xf32>,
    return
  }
  func.func @transform_0(%arg0: i32) -> (i32, i32, i32) {
    %c0_i32 = arith.constant 0 : i32
    %c0_i32_0 = arith.constant 0 : i32
    %c0_i32_1 = arith.constant 0 : i32
    return %arg0, %c0_i32, %c0_i32_0 : i32, i32, i32
  }
  func.func @transform_1(%arg0: i32) -> (i32, i32, i32) {
    %c0_i32 = arith.constant 0 : i32
    %c0_i32_0 = arith.constant 0 : i32
    %c0_i32_1 = arith.constant 0 : i32
    %c0_i32_2 = arith.constant 0 : i32
    return %c0_i32, %c0_i32_0, %c0_i32_1 : i32, i32, i32
  }
  func.func @transform_2(%arg0: i32) -> (i32, i32, i32) {
    %c0_i32 = arith.constant 0 : i32
    %c0_i32_0 = arith.constant 0 : i32
    %c0_i32_1 = arith.constant 0 : i32
    %c0_i32_2 = arith.constant 0 : i32
    return %c0_i32, %c0_i32_0, %c0_i32_1 : i32, i32, i32
  }
  func.func @transform_3(%arg0: i32) -> (i32, i32, i32) {
    %c0_i32 = arith.constant 0 : i32
    %c0_i32_0 = arith.constant 0 : i32
    %c0_i32_1 = arith.constant 0 : i32
    return %arg0, %c0_i32, %c0_i32_0 : i32, i32, i32
  }
}

</mosaic_0001>

<llo_original>
// kernel: tpu_custom_call.1
$region0: #{tpu_custom_call.1}
  #allocation0 [shape = 'u32[]', space=smem, size = 0x4, offset = 0x4, fixed_abs, tag = 'smem constant byte address 0x4 - core index']
  #allocation1 [shape = 'u32[144,128]{1,0:T(1,128)}', space=vmem, size = 0x12000, scoped, tag = 'internal scratch']
  #allocation2 [shape = 'bf16[32,128]{1,0:T(16,128)(2,1)}', space=vmem, size = 0x2000, scoped, tag = 'scratch operand']
  %s0 = inlined_call_operand.hbm [shape: bf16[2,16,128], index: 0, kind: input, shape index: {}]
  %s1 = inlined_call_operand.hbm [shape: bf16[2,384,128], index: 1, kind: input, shape index: {}]
  %s2 = inlined_call_operand.vmem [shape: f32[2,1,128], index: 2, kind: input, shape index: {}]
  %s3 = inlined_call_operand.hbm [shape: f32[2,16,128], index: 3, kind: output, shape index: {}]
  %s4 = sld [smem:[#allocation0]]
  $region53: #{tpu_custom_call.1} parent=0
    _
  %s6 = ssub.s32 1, %s4
  %s7 = scalar_select 0, %s6, %s4
  $region1: #{tpu_custom_call.1} parent=0
    #allocation3 [shape = 'u8[8192]{0}', space=vmem, size = 0x2000, scoped, tag = 'input window, operand 0']
    #allocation4 [shape = 's32[2]{0}', space=sflag, size = 0x8, scoped, tag = 'scoped memory for tpu_custom_call.1']
    #allocation5 [shape = 's32[2]{0}', space=sflag, size = 0x8, scoped, tag = 'scoped memory for tpu_custom_call.1']
    #allocation6 [shape = 'u8[196608]{0}', space=vmem, size = 0x30000, scoped, tag = 'input window, operand 1, single buffered']
    #allocation7 [shape = 's32[1]{0}', space=sflag, size = 0x4, scoped, tag = 'scoped memory for tpu_custom_call.1']
    #allocation8 [shape = 'u8[16384]{0}', space=vmem, size = 0x4000, scoped, tag = 'output window, operand 0']
    %8 = vsyncpa [#allocation4], 0
    %s9 = scalar_lea.sflag [#allocation4], 1
    %10 = vsyncpa %s9, 0
    %11 = vsyncpa [#allocation7], 0
    %12 = vsyncpa [#allocation5], 0
    %s13 = scalar_lea.sflag [#allocation5], 1
    %14 = vsyncpa %s13, 0
    loop: start=0, step=1, limit=4
    $region2: #{tpu_custom_call.1} parent=1 // loop_pre_header
      _
    $region3: #{tpu_custom_call.1} parent=1 // loop_header
      %s16 = sphi 0, %s20
      %p17 = scmp.ge.s32.totalorder %s16, 4
      %s26 = sphi 0, %s28
      %s29 = sphi 0, %s26
      %s30 = sphi 0, %s29
      %s46 = sphi 0, %s30
      %s50 = sphi 0, %s50
      %s52 = sphi 0, %s50
      %s53 = sphi 0, %s52
      %s67 = sphi 0, %s53
      %s71 = sphi 0, %s71
      %s73 = sphi 0, %s71
      %s74 = sphi 0, %s73
      %s88 = sphi 0, %s74
      %s94 = sphi 0, %s96
      %s97 = sphi 0, %s94
      %s98 = sphi 0, %s97
      %s114 = sphi 0, %s98
    $region4: #{tpu_custom_call.1} parent=1 // loop_header_branch
      %19 = sbr.rel (%p17) target = $region8
    $region5: #{tpu_custom_call.1} parent=1 // loop_body
      %s21 = ssub.s32 %s16, 1
      %s22 = ssub.s32 %s16, 2
      %s23 = sadd.s32 %s16, 1
      %s24 = ssub.s32 %s16, %s23
      %p25 = scmp.eq.s32.totalorder %s24, 0
      %s27 = sadd.s32 %s26, 1
      %s28 = scalar_select %p25, %s26, %s27
      %p31 = pneg %p25
      %p32 = scmp.eq.s32.totalorder %s16, 1
      %p33 = por %p31, %p32
      %p34 = scmp.ne.s32.totalorder %s26, %s29
      %p35 = scmp.eq.s32.totalorder %s16, 0
      %p36 = por %p34, %p35
      %p37 = scmp.ne.s32.totalorder %s26, %s29
      %p38 = scmp.eq.s32.totalorder %s21, 1
      %p39 = por %p37, %p38
      %p40 = scmp.ne.s32.totalorder %s29, %s30
      %p41 = scmp.eq.s32.totalorder %s21, 0
      %p42 = por %p40, %p41
      %p43 = scmp.ne.s32.totalorder %s29, %s30
      %p44 = scmp.eq.s32.totalorder %s22, 1
      %p45 = por %p43, %p44
      %p47 = scmp.ne.s32.totalorder %s30, %s46
      %p48 = scmp.eq.s32.totalorder %s22, 0
      %p49 = por %p47, %p48
      %s51 = sadd.s32 %s50, 1
      %p54 = scmp.eq.s32.totalorder %s16, 1
      %p55 = scmp.ne.s32.totalorder %s50, %s52
      %p56 = scmp.eq.s32.totalorder %s16, 0
      %p57 = por %p55, %p56
      %p58 = scmp.ne.s32.totalorder %s50, %s52
      %p59 = scmp.eq.s32.totalorder %s21, 1
      %p60 = por %p58, %p59
      %p61 = scmp.ne.s32.totalorder %s52, %s53
      %p62 = scmp.eq.s32.totalorder %s21, 0
      %p63 = por %p61, %p62
      %p64 = scmp.ne.s32.totalorder %s52, %s53
      %p65 = scmp.eq.s32.totalorder %s22, 1
      %p66 = por %p64, %p65
      %p68 = scmp.ne.s32.totalorder %s53, %s67
      %p69 = scmp.eq.s32.totalorder %s22, 0
      %p70 = por %p68, %p69
      %s72 = sadd.s32 %s71, 1
      %p75 = scmp.eq.s32.totalorder %s16, 1
      %p76 = scmp.ne.s32.totalorder %s71, %s73
      %p77 = scmp.eq.s32.totalorder %s16, 0
      %p78 = por %p76, %p77
      %p79 = scmp.ne.s32.totalorder %s71, %s73
      %p80 = scmp.eq.s32.totalorder %s21, 1
      %p81 = por %p79, %p80
      %p82 = scmp.ne.s32.totalorder %s73, %s74
      %p83 = scmp.eq.s32.totalorder %s21, 0
      %p84 = por %p82, %p83
      %p85 = scmp.ne.s32.totalorder %s73, %s74
      %p86 = scmp.eq.s32.totalorder %s22, 1
      %p87 = por %p85, %p86
      %p89 = scmp.ne.s32.totalorder %s74, %s88
      %p90 = scmp.eq.s32.totalorder %s22, 0
      %p91 = por %p89, %p90
      %s92 = ssub.s32 %s16, %s23
      %p93 = scmp.eq.s32.totalorder %s92, 0
      %s95 = sadd.s32 %s94, 1
      %s96 = scalar_select %p93, %s94, %s95
      %p99 = pneg %p93
      %p100 = scmp.eq.s32.totalorder %s16, 1
      %p101 = por %p99, %p100
      %p102 = scmp.ne.s32.totalorder %s94, %s97
      %p103 = scmp.eq.s32.totalorder %s16, 0
      %p104 = por %p102, %p103
      %p105 = scmp.ne.s32.totalorder %s94, %s97
      %p106 = scmp.eq.s32.totalorder %s21, 1
      %p107 = por %p105, %p106
      %p108 = scmp.ne.s32.totalorder %s97, %s98
      %p109 = scmp.eq.s32.totalorder %s21, 0
      %p110 = por %p108, %p109
      %p111 = scmp.ne.s32.totalorder %s97, %s98
      %p112 = scmp.eq.s32.totalorder %s22, 1
      %p113 = por %p111, %p112
      %p115 = scmp.ne.s32.totalorder %s98, %s114
      %p116 = scmp.eq.s32.totalorder %s22, 0
      %p117 = por %p115, %p116
      %p118 = scmp.le.s32.totalorder 1, %s16
      %p119 = scmp.lt.s32.totalorder %s16, 3
      %p120 = pnand %p118, %p119
      %p121 = pneg %p120
      // Predicated region
      $region9: #{tpu_custom_call.1} parent=5 // pred_check
        _
      $region10: #{tpu_custom_call.1} parent=5 // pred_check_branch
        %123 = sbr.rel (%p120) target = $region12
      $region11: #{tpu_custom_call.1} parent=5 // pred_region
        %s124 = ssub.s32 %s16, 1
        // Predicated region
        $region13: #{tpu_custom_call.1} parent=11 // pred_check
          %p125 = pneg %p63
        $region14: #{tpu_custom_call.1} parent=11 // pred_check_branch
          %127 = sbr.rel (%p125) target = $region16
        $region15: #{tpu_custom_call.1} parent=11 // pred_region
          %s129 = ssub.s32 6144, 6144
          %130 = vsyncadd [#allocation7], %s129
          %s131 = sshll.u32 [#allocation6], 4
          %s132 = int_to_ptr.vmem [resolvable:$true] %s131
          %137 = dma.hbm_to_vmem [thread:$0]  %s1, 6144, %s132, [#allocation7], 64, 64, 4
        $region16: #{tpu_custom_call.1} parent=11 // pred_fallthru
          _
        // Predicated region
        $region17: #{tpu_custom_call.1} parent=11 // pred_check
          %p138 = pneg %p84
        $region18: #{tpu_custom_call.1} parent=11 // pred_check_branch
          %140 = sbr.rel (%p138) target = $region20
        $region19: #{tpu_custom_call.1} parent=11 // pred_region
          _
        $region20: #{tpu_custom_call.1} parent=11 // pred_fallthru
          _
      $region12: #{tpu_custom_call.1} parent=5 // pred_fallthru
        _
      %p141 = scmp.lt.s32.totalorder %s16, 2
      // Predicated region
      $region21: #{tpu_custom_call.1} parent=5 // pred_check
        %p142 = pneg %p141
      $region22: #{tpu_custom_call.1} parent=5 // pred_check_branch
        %144 = sbr.rel (%p142) target = $region24
      $region23: #{tpu_custom_call.1} parent=5 // pred_region
        // Predicated region
        $region25: #{tpu_custom_call.1} parent=23 // pred_check
          %p145 = pneg %p36
        $region26: #{tpu_custom_call.1} parent=23 // pred_check_branch
          %147 = sbr.rel (%p145) target = $region28
        $region27: #{tpu_custom_call.1} parent=23 // pred_region
          %s148 = sand.u32 %s26, 1
          %s149 = scalar_lea.sflag [#allocation4], %s148
          %s150 = sand.u32 %s26, 1
          %s151 = smul.addr %s150, 8
          %s152 = scalar_lea.vmem [#allocation3], %s151
          %s154 = ssub.s32 128, 128
          %155 = vsyncadd %s149, %s154
          %s156 = smul.addr %s16, 2
          %s157 = smul.addr %s156, 64
          %s158 = scalar_lea.hbm %s0, %s157
          %s159 = sshll.u32 %s152, 4
          %s160 = int_to_ptr.vmem [resolvable:$true] %s159
          %165 = dma.hbm_to_vmem [thread:$0]  %s158, 128, %s160, %s149, 64, 64, 4
        $region28: #{tpu_custom_call.1} parent=23 // pred_fallthru
          _
      $region24: #{tpu_custom_call.1} parent=5 // pred_fallthru
        _
      %p166 = scmp.le.s32.totalorder 1, %s16
      %p167 = scmp.lt.s32.totalorder %s16, 3
      %p168 = pnand %p166, %p167
      %p169 = pneg %p168
      // Predicated region
      $region29: #{tpu_custom_call.1} parent=5 // pred_check
        _
      $region30: #{tpu_custom_call.1} parent=5 // pred_check_branch
        %171 = sbr.rel (%p168) target = $region32
      $region31: #{tpu_custom_call.1} parent=5 // pred_region
        %s172 = ssub.s32 %s16, 1
        %s173 = sand.u32 %s29, 1
        %s174 = scalar_lea.sflag [#allocation4], %s173
        %s175 = sand.u32 %s29, 1
        %s176 = smul.addr %s175, 8
        %s177 = scalar_lea.vmem [#allocation3], %s176
        // Predicated region
        $region33: #{tpu_custom_call.1} parent=31 // pred_check
          %p178 = pneg %p42
        $region34: #{tpu_custom_call.1} parent=31 // pred_check_branch
          %180 = sbr.rel (%p178) target = $region36
        $region35: #{tpu_custom_call.1} parent=31 // pred_region
          %181 = dma.done %s174, 128
        $region36: #{tpu_custom_call.1} parent=31 // pred_fallthru
          _
        // Predicated region
        $region37: #{tpu_custom_call.1} parent=31 // pred_check
          %p182 = pneg %p63
        $region38: #{tpu_custom_call.1} parent=31 // pred_check_branch
          %184 = sbr.rel (%p182) target = $region40
        $region39: #{tpu_custom_call.1} parent=31 // pred_region
          %185 = dma.done [#allocation7], 6144
        $region40: #{tpu_custom_call.1} parent=31 // pred_fallthru
          _
        %s186 = sand.u32 %s29, 1
        %s187 = scalar_lea.sflag [#allocation4], %s186
        %s188 = sand.u32 %s29, 1
        %s189 = smul.addr %s188, 8
        %s190 = scalar_lea.vmem [#allocation3], %s189
        %p191 = pneg %p42
        %p192 = pneg %p39
        %p193 = pneg %p63
        %p194 = pneg %p60
        %p195 = pneg %p84
        %p196 = pneg %p81
        %p197 = pneg %p110
        %p198 = pneg %p107
        %s199 = sand.u32 %s97, 1
        %s200 = scalar_lea.sflag [#allocation5], %s199
        %s201 = sand.u32 %s97, 1
        %s202 = smul.addr %s201, 16
        %s203 = scalar_lea.vmem [#allocation8], %s202
        %205 = vst [vmem:[#allocation2] sm:$0xf] 0
        %206 = vst [vmem:[#allocation2 + $0x8] sm:$0xf0] 0
        %v207 = vld [vmem:[%s177] sm:$0xf]
        %v208 = vld [vmem:[%s177 + $0x4] sm:$0xf]
        %v211 = vunpack.c.l.b16 %v207
        %v212 = vunpack.c.l.b16 %v208
        %v213 = vpack.c.b16 %v211, %v211
        %v214 = vpack.c.b16 %v212, %v212
        %217 = vst [vmem:[#allocation2] sm:$0xf0] %v213
        %218 = vst [vmem:[#allocation2 + $0x8] sm:$0xf] %v214
        %v219 = vld [vmem:[#allocation2] sm:$0xf8]
        %v220 = vld [vmem:[#allocation2 + $0x8] sm:$0xf]
        %v221 = vld [vmem:[#allocation2] sm:$0xf0]
        %v222 = vld [vmem:[#allocation2 + $0x8] sm:$0x1f]
        %vm223 = vsmask.f32 7424
        %v225 = vshrl.u32 %v221, 16
        %v227 = vshll.u32 %v221, 16
        %v229 = vrot.slane %v227, 1
        %v230 = vor.u32 %v225, %v229
        %v232 = vshll.u32 %v220, 16
        %v234 = vrot.slane %v232, 1
        %v235 = vsel %vm223, %v230, %v234
        %v236 = vshrl.u32 %v220, 16
        %v238 = vor.u32 %v236, %v234
        %vm241 = vcmask 1046528
        %v242 = vrot.slane %v221, 1
        %v243 = vrot.slane %v222, 1
        %v244 = vsel %vm241, %v242, %v243
        %v245 = vld [vmem:[#allocation6] sm:$0xf]
        %v246 = vld [vmem:[#allocation6 + $0x4] sm:$0xf]
        %v247 = vld [vmem:[#allocation6 + $0x8] sm:$0xf]
        %v248 = vld [vmem:[#allocation6 + $0xc] sm:$0xf]
        %v249 = vld [vmem:[#allocation6 + $0x10] sm:$0xf]
        %v250 = vld [vmem:[#allocation6 + $0x14] sm:$0xf]
        %v251 = vld [vmem:[#allocation6 + $0x18] sm:$0xf]
        %v252 = vld [vmem:[#allocation6 + $0x1c] sm:$0xf]
        %v253 = vld [vmem:[#allocation6 + $0x20] sm:$0xf]
        %v254 = vld [vmem:[#allocation6 + $0x24] sm:$0xf]
        %v255 = vld [vmem:[#allocation6 + $0x28] sm:$0xf]
        %v256 = vld [vmem:[#allocation6 + $0x2c] sm:$0xf]
        %v257 = vld [vmem:[#allocation6 + $0x30] sm:$0xf]
        %v258 = vld [vmem:[#allocation6 + $0x34] sm:$0xf]
        %v259 = vld [vmem:[#allocation6 + $0x38] sm:$0xf]
        %v260 = vld [vmem:[#allocation6 + $0x3c] sm:$0xf]
        %v261 = vld [vmem:[#allocation6 + $0x40] sm:$0xf]
        %v262 = vld [vmem:[#allocation6 + $0x44] sm:$0xf]
        %v263 = vld [vmem:[#allocation6 + $0x48] sm:$0xf]
        %v264 = vld [vmem:[#allocation6 + $0x4c] sm:$0xf]
        %v265 = vld [vmem:[#allocation6 + $0x50] sm:$0xf]
        %v266 = vld [vmem:[#allocation6 + $0x54] sm:$0xf]
        %v267 = vld [vmem:[#allocation6 + $0x58] sm:$0xf]
        %v268 = vld [vmem:[#allocation6 + $0x5c] sm:$0xf]
        %v269 = vld [vmem:[#allocation6 + $0x60] sm:$0xf]
        %v270 = vld [vmem:[#allocation6 + $0x64] sm:$0xf]
        %v271 = vld [vmem:[#allocation6 + $0x68] sm:$0xf]
        %v272 = vld [vmem:[#allocation6 + $0x6c] sm:$0xf]
        %v273 = vld [vmem:[#allocation6 + $0x70] sm:$0xf]
        %v274 = vld [vmem:[#allocation6 + $0x74] sm:$0xf]
        %v275 = vld [vmem:[#allocation6 + $0x78] sm:$0xf]
        %v276 = vld [vmem:[#allocation6 + $0x7c] sm:$0xf]
        %v277 = vld [vmem:[#allocation6 + $0x80] sm:$0xf]
        %v278 = vld [vmem:[#allocation6 + $0x84] sm:$0xf]
        %v279 = vld [vmem:[#allocation6 + $0x88] sm:$0xf]
        %v280 = vld [vmem:[#allocation6 + $0x8c] sm:$0xf]
        %v281 = vld [vmem:[#allocation6 + $0x90] sm:$0xf]
        %v282 = vld [vmem:[#allocation6 + $0x94] sm:$0xf]
        %v283 = vld [vmem:[#allocation6 + $0x98] sm:$0xf]
        %v284 = vld [vmem:[#allocation6 + $0x9c] sm:$0xf]
        %v285 = vld [vmem:[#allocation6 + $0xa0] sm:$0xf]
        %v286 = vld [vmem:[#allocation6 + $0xa4] sm:$0xf]
        %v287 = vld [vmem:[#allocation6 + $0xa8] sm:$0xf]
        %v288 = vld [vmem:[#allocation6 + $0xac] sm:$0xf]
        %v289 = vld [vmem:[#allocation6 + $0xb0] sm:$0xf]
        %v290 = vld [vmem:[#allocation6 + $0xb4] sm:$0xf]
        %v291 = vld [vmem:[#allocation6 + $0xb8] sm:$0xf]
        %v292 = vld [vmem:[#allocation6 + $0xbc] sm:$0xf]
        %v293 = vld [vmem:[%s2] sm:$0x1]
        %v295 = vlaneseq
        %v296 = vshrl.u32 %v295, 7
        %v297 = vsub.s32 0, %v296
        %v298 = vrot.slane %v293, %v297
        %vm300 = vsmask.f32 4352
        %v302 = vshrl.u32 %v219, 16
        %v304 = vrot.slane %v302, 3
        %v305 = vshll.u32 %v219, 16
        %v307 = vrot.slane %v305, 4
        %v308 = vor.u32 %v304, %v307
        %v309 = vrot.slane %v236, 3
        %v310 = vrot.slane %v232, 4
        %v311 = vor.u32 %v309, %v310
        %v312 = vsel %vm300, %v308, %v311
        %v314 = vshrl.u32 %v235, 16
        %v316 = vrot.slane %v314, 3
        %v317 = vshll.u32 %v235, 16
        %v319 = vrot.slane %v317, 4
        %v320 = vor.u32 %v316, %v319
        %v322 = vshrl.u32 %v238, 16
        %v324 = vrot.slane %v322, 3
        %v325 = vshll.u32 %v238, 16
        %v327 = vrot.slane %v325, 4
        %v328 = vor.u32 %v324, %v327
        %v329 = vsel %vm300, %v320, %v328
        %v331 = vshrl.u32 %v244, 16
        %v333 = vrot.slane %v331, 3
        %v334 = vshll.u32 %v244, 16
        %v336 = vrot.slane %v334, 4
        %v337 = vor.u32 %v333, %v336
        %v339 = vshrl.u32 %v243, 16
        %v341 = vrot.slane %v339, 3
        %v342 = vshll.u32 %v243, 16
        %v344 = vrot.slane %v342, 4
        %v345 = vor.u32 %v341, %v344
        %v346 = vsel %vm300, %v337, %v345
        %v398 = vunpack.c.l.b16 %v245
        %v399 = vunpack.c.l.b16 %v246
        %v400 = vunpack.c.l.b16 %v247
        %v401 = vunpack.c.l.b16 %v248
        %v402 = vunpack.c.l.b16 %v249
        %v403 = vunpack.c.l.b16 %v250
        %v404 = vunpack.c.l.b16 %v251
        %v405 = vunpack.c.l.b16 %v252
        %v406 = vunpack.c.l.b16 %v253
        %v407 = vunpack.c.l.b16 %v254
        %v408 = vunpack.c.l.b16 %v255
        %v409 = vunpack.c.l.b16 %v256
        %v410 = vunpack.c.l.b16 %v257
        %v411 = vunpack.c.l.b16 %v258
        %v412 = vunpack.c.l.b16 %v259
        %v413 = vunpack.c.l.b16 %v260
        %v414 = vunpack.c.l.b16 %v261
        %v415 = vunpack.c.l.b16 %v262
        %v416 = vunpack.c.l.b16 %v263
        %v417 = vunpack.c.l.b16 %v264
        %v418 = vunpack.c.l.b16 %v265
        %v419 = vunpack.c.l.b16 %v266
        %v420 = vunpack.c.l.b16 %v267
        %v421 = vunpack.c.l.b16 %v268
        %v422 = vunpack.c.l.b16 %v269
        %v423 = vunpack.c.l.b16 %v270
        %v424 = vunpack.c.l.b16 %v271
        %v425 = vunpack.c.l.b16 %v272
        %v426 = vunpack.c.l.b16 %v273
        %v427 = vunpack.c.l.b16 %v274
        %v428 = vunpack.c.l.b16 %v275
        %v429 = vunpack.c.l.b16 %v276
        %v430 = vunpack.c.l.b16 %v277
        %v431 = vunpack.c.l.b16 %v278
        %v432 = vunpack.c.l.b16 %v279
        %v433 = vunpack.c.l.b16 %v280
        %v434 = vunpack.c.l.b16 %v281
        %v435 = vunpack.c.l.b16 %v282
        %v436 = vunpack.c.l.b16 %v283
        %v437 = vunpack.c.l.b16 %v284
        %v438 = vunpack.c.l.b16 %v285
        %v439 = vunpack.c.l.b16 %v286
        %v440 = vunpack.c.l.b16 %v287
        %v441 = vunpack.c.l.b16 %v288
        %v442 = vunpack.c.l.b16 %v289
        %v443 = vunpack.c.l.b16 %v290
        %v444 = vunpack.c.l.b16 %v291
        %v445 = vunpack.c.l.b16 %v292
        %v446 = vpack.c.b16 %v399, %v398
        %v447 = vpack.c.b16 %v401, %v400
        %v448 = vpack.c.b16 %v403, %v402
        %v449 = vpack.c.b16 %v405, %v404
        %v450 = vpack.c.b16 %v407, %v406
        %v451 = vpack.c.b16 %v409, %v408
        %v452 = vpack.c.b16 %v411, %v410
        %v453 = vpack.c.b16 %v413, %v412
        %v454 = vpack.c.b16 %v415, %v414
        %v455 = vpack.c.b16 %v417, %v416
        %v456 = vpack.c.b16 %v419, %v418
        %v457 = vpack.c.b16 %v421, %v420
        %v458 = vpack.c.b16 %v423, %v422
        %v459 = vpack.c.b16 %v425, %v424
        %v460 = vpack.c.b16 %v427, %v426
        %v461 = vpack.c.b16 %v429, %v428
        %v462 = vpack.c.b16 %v431, %v430
        %v463 = vpack.c.b16 %v433, %v432
        %v464 = vpack.c.b16 %v435, %v434
        %v465 = vpack.c.b16 %v437, %v436
        %v466 = vpack.c.b16 %v439, %v438
        %v467 = vpack.c.b16 %v441, %v440
        %v468 = vpack.c.b16 %v443, %v442
        %v469 = vpack.c.b16 %v445, %v444
        %494 = vmatprep.subr.bf16.mxu0 0
        %495 = vmatpush1.bf16.msra.mxu0 %v446
        %496 = vmatprep.subr.bf16.mxu0 0
        %497 = vmatpush1.bf16.msra.mxu0 %v447
        %498 = vmatprep.subr.bf16.mxu0 0
        %499 = vmatpush1.bf16.msra.mxu0 %v448
        %500 = vmatprep.subr.bf16.mxu0 0
        %501 = vmatpush1.bf16.msra.mxu0 %v449
        %502 = vmatprep.subr.bf16.mxu0 0
        %503 = vmatpush1.bf16.msra.mxu0 %v450
        %504 = vmatprep.subr.bf16.mxu0 0
        %505 = vmatpush1.bf16.msra.mxu0 %v451
        %506 = vmatprep.subr.bf16.mxu0 0
        %507 = vmatpush1.bf16.msra.mxu0 %v452
        %508 = vmatprep.subr.bf16.mxu0 0
        %509 = vmatpush1.bf16.msra.mxu0 %v453
        %510 = vmatprep.subr.bf16.mxu0 0
        %511 = vmatpush1.bf16.msra.mxu0 %v454
        %512 = vmatprep.subr.bf16.mxu0 0
        %513 = vmatpush1.bf16.msra.mxu0 %v455
        %514 = vmatprep.subr.bf16.mxu0 0
        %515 = vmatpush1.bf16.msra.mxu0 %v456
        %516 = vmatprep.subr.bf16.mxu0 0
        %517 = vmatpush1.bf16.msra.mxu0 %v457
        %518 = vmatprep.subr.bf16.mxu0 0
        %519 = vmatpush1.bf16.msra.mxu0 %v458
        %520 = vmatprep.subr.bf16.mxu0 0
        %521 = vmatpush1.bf16.msra.mxu0 %v459
        %522 = vmatprep.subr.bf16.mxu0 0
        %523 = vmatpush1.bf16.msra.mxu0 %v460
        %524 = vmatprep.subr.bf16.mxu0 0
        %525 = vmatpush1.bf16.msra.mxu0 %v461
        %526 = vmatprep.mubr.bf16.mxu0 %v329
        %527 = vmatmul.mubr.bf16.gmra.mrb[0].mxu0 %v312
        %v528 = vpop.f32.mrb[0].mxu0
        %v529 = vadd.f32 %v298, %v528
        %v530 = vpop.f32.mrb[0].mxu0
        %v531 = vpop.f32.mrb[0].mxu0
        %v532 = vadd.f32 %v298, %v531
        %v533 = vpop.f32.mrb[0].mxu0
        %534 = vdwg.mxu0
        %535 = vmatprep.subr.bf16.mxu0 0
        %536 = vmatpush1.bf16.msra.mxu0 %v462
        %537 = vmatprep.subr.bf16.mxu0 0
        %538 = vmatpush1.bf16.msra.mxu0 %v463
        %539 = vmatprep.subr.bf16.mxu0 0
        %540 = vmatpush1.bf16.msra.mxu0 %v464
        %541 = vmatprep.subr.bf16.mxu0 0
        %542 = vmatpush1.bf16.msra.mxu0 %v465
        %543 = vmatprep.subr.bf16.mxu0 0
        %544 = vmatpush1.bf16.msra.mxu0 %v466
        %545 = vmatprep.subr.bf16.mxu0 0
        %546 = vmatpush1.bf16.msra.mxu0 %v467
        %547 = vmatprep.subr.bf16.mxu0 0
        %548 = vmatpush1.bf16.msra.mxu0 %v468
        %549 = vmatprep.subr.bf16.mxu0 0
        %550 = vmatpush1.bf16.msra.mxu0 %v469
        %551 = vmatprep.subr.bf16.mxu0 0
        %552 = vmatpush1.bf16.msra.mxu0 0
        %553 = vmatprep.subr.bf16.mxu0 0
        %554 = vmatpush1.bf16.msra.mxu0 0
        %555 = vmatprep.subr.bf16.mxu0 0
        %556 = vmatpush1.bf16.msra.mxu0 0
        %557 = vmatprep.subr.bf16.mxu0 0
        %558 = vmatpush1.bf16.msra.mxu0 0
        %559 = vmatprep.subr.bf16.mxu0 0
        %560 = vmatpush1.bf16.msra.mxu0 0
        %561 = vmatprep.subr.bf16.mxu0 0
        %562 = vmatpush1.bf16.msra.mxu0 0
        %563 = vmatprep.subr.bf16.mxu0 0
        %564 = vmatpush1.bf16.msra.mxu0 0
        %565 = vmatprep.subr.bf16.mxu0 0
        %566 = vmatpush1.bf16.msra.mxu0 0
        %567 = vmatprep.mubr.bf16.mxu0 0
        %568 = vmatmul.mubr.bf16.gmra.mrb[0].mxu0 %v346
        %v569 = vpop.f32.mrb[0].mxu0
        %v570 = vadd.f32 %v529, %v569
        %v571 = vpop.f32.mrb[0].mxu0
        %v572 = vpop.f32.mrb[0].mxu0
        %v573 = vadd.f32 %v532, %v572
        %v574 = vpop.f32.mrb[0].mxu0
        %575 = vdwg.mxu0
        %v576 = vmax.f32 %v570, 0.0
        %v577 = vmax.f32 %v573, 0.0
        %v578 = vpack.c.bf16 %v577, %v576
        %v580 = vrot.slane %v578, 4
        %582 = vst [vmem:[#allocation2] sm:$0xf0] %v580
        %583 = vst [vmem:[#allocation2 + $0x8] sm:$0xf] %v580
        %v584 = vld [vmem:[#allocation2] sm:$0xf8]
        %v585 = vld [vmem:[#allocation2 + $0x8] sm:$0xf]
        %v586 = vld [vmem:[#allocation2] sm:$0xf0]
        %v587 = vld [vmem:[#allocation2 + $0x8] sm:$0x1f]
        %v589 = vshrl.u32 %v586, 16
        %v591 = vshll.u32 %v586, 16
        %v593 = vrot.slane %v591, 1
        %v594 = vor.u32 %v589, %v593
        %v596 = vshll.u32 %v585, 16
        %v598 = vrot.slane %v596, 1
        %v599 = vsel %vm223, %v594, %v598
        %v600 = vshrl.u32 %v585, 16
        %v602 = vor.u32 %v600, %v598
        %v605 = vrot.slane %v586, 1
        %v606 = vrot.slane %v587, 1
        %v607 = vsel %vm241, %v605, %v606
        %s608 = scalar_lea.vmem [#allocation6], 192
        %v609 = vld [vmem:[%s608] sm:$0xf]
        %v610 = vld [vmem:[%s608 + $0x4] sm:$0xf]
        %v611 = vld [vmem:[%s608 + $0x8] sm:$0xf]
        %v612 = vld [vmem:[%s608 + $0xc] sm:$0xf]
        %v613 = vld [vmem:[%s608 + $0x10] sm:$0xf]
        %v614 = vld [vmem:[%s608 + $0x14] sm:$0xf]
        %v615 = vld [vmem:[%s608 + $0x18] sm:$0xf]
        %v616 = vld [vmem:[%s608 + $0x1c] sm:$0xf]
        %v617 = vld [vmem:[%s608 + $0x20] sm:$0xf]
        %v618 = vld [vmem:[%s608 + $0x24] sm:$0xf]
        %v619 = vld [vmem:[%s608 + $0x28] sm:$0xf]
        %v620 = vld [vmem:[%s608 + $0x2c] sm:$0xf]
        %v621 = vld [vmem:[%s608 + $0x30] sm:$0xf]
        %v622 = vld [vmem:[%s608 + $0x34] sm:$0xf]
        %v623 = vld [vmem:[%s608 + $0x38] sm:$0xf]
        %v624 = vld [vmem:[%s608 + $0x3c] sm:$0xf]
        %v625 = vld [vmem:[%s608 + $0x40] sm:$0xf]
        %v626 = vld [vmem:[%s608 + $0x44] sm:$0xf]
        %v627 = vld [vmem:[%s608 + $0x48] sm:$0xf]
        %v628 = vld [vmem:[%s608 + $0x4c] sm:$0xf]
        %v629 = vld [vmem:[%s608 + $0x50] sm:$0xf]
        %v630 = vld [vmem:[%s608 + $0x54] sm:$0xf]
        %v631 = vld [vmem:[%s608 + $0x58] sm:$0xf]
        %v632 = vld [vmem:[%s608 + $0x5c] sm:$0xf]
        %v633 = vld [vmem:[%s608 + $0x60] sm:$0xf]
        %v634 = vld [vmem:[%s608 + $0x64] sm:$0xf]
        %v635 = vld [vmem:[%s608 + $0x68] sm:$0xf]
        %v636 = vld [vmem:[%s608 + $0x6c] sm:$0xf]
        %v637 = vld [vmem:[%s608 + $0x70] sm:$0xf]
        %v638 = vld [vmem:[%s608 + $0x74] sm:$0xf]
        %v639 = vld [vmem:[%s608 + $0x78] sm:$0xf]
        %v640 = vld [vmem:[%s608 + $0x7c] sm:$0xf]
        %v641 = vld [vmem:[%s608 + $0x80] sm:$0xf]
        %v642 = vld [vmem:[%s608 + $0x84] sm:$0xf]
        %v643 = vld [vmem:[%s608 + $0x88] sm:$0xf]
        %v644 = vld [vmem:[%s608 + $0x8c] sm:$0xf]
        %v645 = vld [vmem:[%s608 + $0x90] sm:$0xf]
        %v646 = vld [vmem:[%s608 + $0x94] sm:$0xf]
        %v647 = vld [vmem:[%s608 + $0x98] sm:$0xf]
        %v648 = vld [vmem:[%s608 + $0x9c] sm:$0xf]
        %v649 = vld [vmem:[%s608 + $0xa0] sm:$0xf]
        %v650 = vld [vmem:[%s608 + $0xa4] sm:$0xf]
        %v651 = vld [vmem:[%s608 + $0xa8] sm:$0xf]
        %v652 = vld [vmem:[%s608 + $0xac] sm:$0xf]
        %v653 = vld [vmem:[%s608 + $0xb0] sm:$0xf]
        %v654 = vld [vmem:[%s608 + $0xb4] sm:$0xf]
        %v655 = vld [vmem:[%s608 + $0xb8] sm:$0xf]
        %v656 = vld [vmem:[%s608 + $0xbc] sm:$0xf]
        %s657 = scalar_lea.vmem %s2, 1
        %v658 = vld [vmem:[%s657] sm:$0x1]
        %v660 = vlaneseq
        %v661 = vshrl.u32 %v660, 7
        %v662 = vsub.s32 0, %v661
        %v663 = vrot.slane %v658, %v662
        %v666 = vshrl.u32 %v584, 16
        %v668 = vrot.slane %v666, 3
        %v669 = vshll.u32 %v584, 16
        %v671 = vrot.slane %v669, 4
        %v672 = vor.u32 %v668, %v671
        %v673 = vrot.slane %v600, 3
        %v674 = vrot.slane %v596, 4
        %v675 = vor.u32 %v673, %v674
        %v676 = vsel %vm300, %v672, %v675
        %v678 = vshrl.u32 %v599, 16
        %v680 = vrot.slane %v678, 3
        %v681 = vshll.u32 %v599, 16
        %v683 = vrot.slane %v681, 4
        %v684 = vor.u32 %v680, %v683
        %v686 = vshrl.u32 %v602, 16
        %v688 = vrot.slane %v686, 3
        %v689 = vshll.u32 %v602, 16
        %v691 = vrot.slane %v689, 4
        %v692 = vor.u32 %v688, %v691
        %v693 = vsel %vm300, %v684, %v692
        %v695 = vshrl.u32 %v607, 16
        %v697 = vrot.slane %v695, 3
        %v698 = vshll.u32 %v607, 16
        %v700 = vrot.slane %v698, 4
        %v701 = vor.u32 %v697, %v700
        %v703 = vshrl.u32 %v606, 16
        %v705 = vrot.slane %v703, 3
        %v706 = vshll.u32 %v606, 16
        %v708 = vrot.slane %v706, 4
        %v709 = vor.u32 %v705, %v708
        %v710 = vsel %vm300, %v701, %v709
        %v762 = vunpack.c.l.b16 %v609
        %v763 = vunpack.c.l.b16 %v610
        %v764 = vunpack.c.l.b16 %v611
        %v765 = vunpack.c.l.b16 %v612
        %v766 = vunpack.c.l.b16 %v613
        %v767 = vunpack.c.l.b16 %v614
        %v768 = vunpack.c.l.b16 %v615
        %v769 = vunpack.c.l.b16 %v616
        %v770 = vunpack.c.l.b16 %v617
        %v771 = vunpack.c.l.b16 %v618
        %v772 = vunpack.c.l.b16 %v619
        %v773 = vunpack.c.l.b16 %v620
        %v774 = vunpack.c.l.b16 %v621
        %v775 = vunpack.c.l.b16 %v622
        %v776 = vunpack.c.l.b16 %v623
        %v777 = vunpack.c.l.b16 %v624
        %v778 = vunpack.c.l.b16 %v625
        %v779 = vunpack.c.l.b16 %v626
        %v780 = vunpack.c.l.b16 %v627
        %v781 = vunpack.c.l.b16 %v628
        %v782 = vunpack.c.l.b16 %v629
        %v783 = vunpack.c.l.b16 %v630
        %v784 = vunpack.c.l.b16 %v631
        %v785 = vunpack.c.l.b16 %v632
        %v786 = vunpack.c.l.b16 %v633
        %v787 = vunpack.c.l.b16 %v634
        %v788 = vunpack.c.l.b16 %v635
        %v789 = vunpack.c.l.b16 %v636
        %v790 = vunpack.c.l.b16 %v637
        %v791 = vunpack.c.l.b16 %v638
        %v792 = vunpack.c.l.b16 %v639
        %v793 = vunpack.c.l.b16 %v640
        %v794 = vunpack.c.l.b16 %v641
        %v795 = vunpack.c.l.b16 %v642
        %v796 = vunpack.c.l.b16 %v643
        %v797 = vunpack.c.l.b16 %v644
        %v798 = vunpack.c.l.b16 %v645
        %v799 = vunpack.c.l.b16 %v646
        %v800 = vunpack.c.l.b16 %v647
        %v801 = vunpack.c.l.b16 %v648
        %v802 = vunpack.c.l.b16 %v649
        %v803 = vunpack.c.l.b16 %v650
        %v804 = vunpack.c.l.b16 %v651
        %v805 = vunpack.c.l.b16 %v652
        %v806 = vunpack.c.l.b16 %v653
        %v807 = vunpack.c.l.b16 %v654
        %v808 = vunpack.c.l.b16 %v655
        %v809 = vunpack.c.l.b16 %v656
        %v810 = vpack.c.b16 %v763, %v762
        %v811 = vpack.c.b16 %v765, %v764
        %v812 = vpack.c.b16 %v767, %v766
        %v813 = vpack.c.b16 %v769, %v768
        %v814 = vpack.c.b16 %v771, %v770
        %v815 = vpack.c.b16 %v773, %v772
        %v816 = vpack.c.b16 %v775, %v774
        %v817 = vpack.c.b16 %v777, %v776
        %v818 = vpack.c.b16 %v779, %v778
        %v819 = vpack.c.b16 %v781, %v780
        %v820 = vpack.c.b16 %v783, %v782
        %v821 = vpack.c.b16 %v785, %v784
        %v822 = vpack.c.b16 %v787, %v786
        %v823 = vpack.c.b16 %v789, %v788
        %v824 = vpack.c.b16 %v791, %v790
        %v825 = vpack.c.b16 %v793, %v792
        %v826 = vpack.c.b16 %v795, %v794
        %v827 = vpack.c.b16 %v797, %v796
        %v828 = vpack.c.b16 %v799, %v798
        %v829 = vpack.c.b16 %v801, %v800
        %v830 = vpack.c.b16 %v803, %v802
        %v831 = vpack.c.b16 %v805, %v804
        %v832 = vpack.c.b16 %v807, %v806
        %v833 = vpack.c.b16 %v809, %v808
        %858 = vmatprep.subr.bf16.mxu0 0
        %859 = vmatpush1.bf16.msra.mxu0 %v810
        %860 = vmatprep.subr.bf16.mxu0 0
        %861 = vmatpush1.bf16.msra.mxu0 %v811
        %862 = vmatprep.subr.bf16.mxu0 0
        %863 = vmatpush1.bf16.msra.mxu0 %v812
        %864 = vmatprep.subr.bf16.mxu0 0
        %865 = vmatpush1.bf16.msra.mxu0 %v813
        %866 = vmatprep.subr.bf16.mxu0 0
        %867 = vmatpush1.bf16.msra.mxu0 %v814
        %868 = vmatprep.subr.bf16.mxu0 0
        %869 = vmatpush1.bf16.msra.mxu0 %v815
        %870 = vmatprep.subr.bf16.mxu0 0
        %871 = vmatpush1.bf16.msra.mxu0 %v816
        %872 = vmatprep.subr.bf16.mxu0 0
        %873 = vmatpush1.bf16.msra.mxu0 %v817
        %874 = vmatprep.subr.bf16.mxu0 0
        %875 = vmatpush1.bf16.msra.mxu0 %v818
        %876 = vmatprep.subr.bf16.mxu0 0
        %877 = vmatpush1.bf16.msra.mxu0 %v819
        %878 = vmatprep.subr.bf16.mxu0 0
        %879 = vmatpush1.bf16.msra.mxu0 %v820
        %880 = vmatprep.subr.bf16.mxu0 0
        %881 = vmatpush1.bf16.msra.mxu0 %v821
        %882 = vmatprep.subr.bf16.mxu0 0
        %883 = vmatpush1.bf16.msra.mxu0 %v822
        %884 = vmatprep.subr.bf16.mxu0 0
        %885 = vmatpush1.bf16.msra.mxu0 %v823
        %886 = vmatprep.subr.bf16.mxu0 0
        %887 = vmatpush1.bf16.msra.mxu0 %v824
        %888 = vmatprep.subr.bf16.mxu0 0
        %889 = vmatpush1.bf16.msra.mxu0 %v825
        %890 = vmatprep.mubr.bf16.mxu0 %v693
        %891 = vmatmul.mubr.bf16.gmra.mrb[0].mxu0 %v676
        %v892 = vpop.f32.mrb[0].mxu0
        %v893 = vadd.f32 %v663, %v892
        %v894 = vpop.f32.mrb[0].mxu0
        %v895 = vpop.f32.mrb[0].mxu0
        %v896 = vadd.f32 %v663, %v895
        %v897 = vpop.f32.mrb[0].mxu0
        %898 = vdwg.mxu0
        %899 = vmatprep.subr.bf16.mxu0 0
        %900 = vmatpush1.bf16.msra.mxu0 %v826
        %901 = vmatprep.subr.bf16.mxu0 0
        %902 = vmatpush1.bf16.msra.mxu0 %v827
        %903 = vmatprep.subr.bf16.mxu0 0
        %904 = vmatpush1.bf16.msra.mxu0 %v828
        %905 = vmatprep.subr.bf16.mxu0 0
        %906 = vmatpush1.bf16.msra.mxu0 %v829
        %907 = vmatprep.subr.bf16.mxu0 0
        %908 = vmatpush1.bf16.msra.mxu0 %v830
        %909 = vmatprep.subr.bf16.mxu0 0
        %910 = vmatpush1.bf16.msra.mxu0 %v831
        %911 = vmatprep.subr.bf16.mxu0 0
        %912 = vmatpush1.bf16.msra.mxu0 %v832
        %913 = vmatprep.subr.bf16.mxu0 0
        %914 = vmatpush1.bf16.msra.mxu0 %v833
        %915 = vmatprep.subr.bf16.mxu0 0
        %916 = vmatpush1.bf16.msra.mxu0 0
        %917 = vmatprep.subr.bf16.mxu0 0
        %918 = vmatpush1.bf16.msra.mxu0 0
        %919 = vmatprep.subr.bf16.mxu0 0
        %920 = vmatpush1.bf16.msra.mxu0 0
        %921 = vmatprep.subr.bf16.mxu0 0
        %922 = vmatpush1.bf16.msra.mxu0 0
        %923 = vmatprep.subr.bf16.mxu0 0
        %924 = vmatpush1.bf16.msra.mxu0 0
        %925 = vmatprep.subr.bf16.mxu0 0
        %926 = vmatpush1.bf16.msra.mxu0 0
        %927 = vmatprep.subr.bf16.mxu0 0
        %928 = vmatpush1.bf16.msra.mxu0 0
        %929 = vmatprep.subr.bf16.mxu0 0
        %930 = vmatpush1.bf16.msra.mxu0 0
        %931 = vmatprep.mubr.bf16.mxu0 0
        %932 = vmatmul.mubr.bf16.gmra.mrb[0].mxu0 %v710
        %v933 = vpop.f32.mrb[0].mxu0
        %v934 = vadd.f32 %v893, %v933
        %v935 = vpop.f32.mrb[0].mxu0
        %v936 = vpop.f32.mrb[0].mxu0
        %v937 = vadd.f32 %v896, %v936
        %v938 = vpop.f32.mrb[0].mxu0
        %939 = vdwg.mxu0
        %v940 = vmax.f32 %v934, 0.0
        %v941 = vmax.f32 %v937, 0.0
        %942 = vst [vmem:[%s203] sm:$0xff] %v940
        %943 = vst [vmem:[%s203 + $0x8] sm:$0xff] %v941
        %s944 = sand.u32 %s97, 1
        %s945 = scalar_lea.sflag [#allocation5], %s944
        %s946 = sand.u32 %s97, 1
        %s947 = smul.addr %s946, 16
        %s948 = scalar_lea.vmem [#allocation8], %s947
        // Predicated region
        $region41: #{tpu_custom_call.1} parent=31 // pred_check
          %p949 = pneg %p107
        $region42: #{tpu_custom_call.1} parent=31 // pred_check_branch
          %951 = sbr.rel (%p949) target = $region44
        $region43: #{tpu_custom_call.1} parent=31 // pred_region
          %s953 = ssub.s32 256, 256
          %954 = vsyncadd %s945, %s953
          %s955 = smul.addr %s21, 2
          %s956 = smul.addr %s955, 128
          %s957 = scalar_lea.hbm %s3, %s956
          %s958 = sshll.u32 %s948, 4
          %s959 = int_to_ptr.vmem [resolvable:$true] %s958
          %964 = dma.vmem_to_hbm [thread:$0]  %s959, 256, %s957, %s945, 128, 128, 8
        $region44: #{tpu_custom_call.1} parent=31 // pred_fallthru
          _
      $region32: #{tpu_custom_call.1} parent=5 // pred_fallthru
        _
      %p965 = scmp.le.s32.totalorder 2, %s16
      // Predicated region
      $region45: #{tpu_custom_call.1} parent=5 // pred_check
        %p966 = pneg %p965
      $region46: #{tpu_custom_call.1} parent=5 // pred_check_branch
        %968 = sbr.rel (%p966) target = $region48
      $region47: #{tpu_custom_call.1} parent=5 // pred_region
        %s969 = ssub.s32 %s16, 2
        // Predicated region
        $region49: #{tpu_custom_call.1} parent=47 // pred_check
          %p970 = pneg %p113
        $region50: #{tpu_custom_call.1} parent=47 // pred_check_branch
          %972 = sbr.rel (%p970) target = $region52
        $region51: #{tpu_custom_call.1} parent=47 // pred_region
          %s973 = sand.u32 %s98, 1
          %s974 = scalar_lea.sflag [#allocation5], %s973
          %s975 = sand.u32 %s98, 1
          %s976 = smul.addr %s975, 16
          %s977 = scalar_lea.vmem [#allocation8], %s976
          %978 = dma.done %s974, 256
        $region52: #{tpu_custom_call.1} parent=47 // pred_fallthru
          _
      $region48: #{tpu_custom_call.1} parent=5 // pred_fallthru
        _
    $region6: #{tpu_custom_call.1} parent=1 // loop_footer
      %s20 = sadd.s32 1, %s16
    $region7: #{tpu_custom_call.1} parent=1 // loop_footer_branch
      %15 = sbr.rel target = $region3
    $region8: #{tpu_custom_call.1} parent=1 // loop_exit
      _
    %979 = vsyncpa [#allocation4], 1
    %s980 = scalar_lea.sflag [#allocation4], 1
    %981 = vsyncpa %s980, 1
    %982 = vsyncpa [#allocation7], 1
    %983 = vsyncpa [#allocation5], 1
    %s984 = scalar_lea.sflag [#allocation5], 1
    %985 = vsyncpa %s984, 1

</llo_original>
